<compile_context>
chip_gen: v5e
topology: v5e:2x2
jax: 0.10.0
libtpu: 0.0.40
codegen_flags: <defaults>
</compile_context>

<pallas_src>
import jax
import jax.numpy as jnp
from jax.experimental import pallas as pl
from jax.experimental.pallas import tpu as pltpu

_LANES = 128


def _bias_kernel(bias_ref, x_ref, o_ref):
    # bias_ref: SMEM scalar (shape (1,)); x_ref / o_ref: VMEM tiles.
    o_ref[...] = x_ref[...] + bias_ref[0]


def bias_forward(x: jax.Array, weight: jax.Array) -> jax.Array:
    """Elementwise broadcast add of a scalar bias, computed in Pallas.

    x: any-shape array (NCHW for conv inputs).
    weight: scalar parameter, shape (1,) or ().
    """
    orig_shape = x.shape
    orig_dtype = x.dtype

    total = x.size
    if total == 0:          # empty input: nothing to do
        return x

    # Normalize weight to shape (1,) so bias_ref[0] is always valid.
    w = jnp.asarray(weight, dtype=orig_dtype).reshape((1,))

    itemsize = jnp.dtype(orig_dtype).itemsize
    # Sublane packing: 8 rows/vreg for 32-bit, 16 for 16-bit, 32 for 8-bit.
    sublane_pack = {4: 8, 2: 16, 1: 32}.get(itemsize, 8)

    # Hot path: total % 128 == 0 -> pure reshape, no extra HBM pass.
    # Cold path (ragged tail): pad once; this adds one extra pass but keeps
    # the kernel itself simple and correct.
    pad = (-total) % _LANES
    x_flat = x.reshape(-1)
    if pad:
        x_flat = jnp.pad(x_flat, (0, pad))
    rows = x_flat.size // _LANES
    x2d = x_flat.reshape(rows, _LANES)

    # Tile choice: ~1 MiB blocks (measured ~85% of HBM roofline for streaming
    # adds), aligned to the dtype sublane pack.  With default 2-deep double
    # buffering on input+output this uses ~4 MiB VMEM -> safe on every
    # generation, including v7x (64 MiB physical / 32 MiB scoped default).
    target_tile_bytes = 1 << 20
    target_rows = max(sublane_pack, target_tile_bytes // (_LANES * itemsize))
    if rows <= target_rows:
        # Whole tensor fits in one (<=1 MiB) block; full-extent block is
        # always layout-legal regardless of rows % sublane_pack.
        tile_rows = rows
        grid = (1,)
    else:
        tile_rows = target_rows                 # multiple of sublane_pack
        grid = (pl.cdiv(rows, tile_rows),)      # ragged last block is masked

    out2d = pl.pallas_call(
        _bias_kernel,
        out_shape=jax.ShapeDtypeStruct((rows, _LANES), orig_dtype),
        grid_spec=pltpu.PrefetchScalarGridSpec(
            num_scalar_prefetch=0,
            grid=grid,
            in_specs=[
                pl.BlockSpec(memory_space=pltpu.MemorySpace.SMEM),   # weight (1,)
                pl.BlockSpec((tile_rows, _LANES), lambda i: (i, 0)),
            ],
            out_specs=pl.BlockSpec((tile_rows, _LANES), lambda i: (i, 0)),
        ),
        compiler_params=pltpu.CompilerParams(
            dimension_semantics=("parallel",),
            vmem_limit_bytes=32 * 1024 * 1024,
        ),
    )(w, x2d)

    out_flat = out2d.reshape(-1)
    if pad:
        out_flat = out_flat[:total]
    return out_flat.reshape(orig_shape)


if __name__ == "__main__":
    key = jax.random.PRNGKey(0)

    # Parameter init per Bias.__init__: weight = zeros(1).
    weight_zero = jnp.zeros((1,), dtype=jnp.float32)
    weight_half = jnp.array([0.5], dtype=jnp.float32)

    # 1) Small NCHW input (hot path, single block).
    x = jax.random.normal(key, (2, 4, 16, 16), dtype=jnp.float32)
    y0 = jax.block_until_ready(bias_forward(x, weight_zero))
    y1 = jax.block_until_ready(bias_forward(x, weight_half))
    assert y0.shape == x.shape and y0.dtype == x.dtype
    assert jnp.allclose(y0, x, atol=1e-6)
    assert jnp.allclose(y1, x + 0.5, atol=1e-6)

    # 2) Larger input exercising the multi-step (pipelined) grid.
    k2 = jax.random.fold_in(key, 1)
    x_big = jax.random.normal(k2, (4, 8, 128, 128), dtype=jnp.float32)  # 4096 rows -> grid=(2,)
    y_big = jax.block_until_ready(bias_forward(x_big, weight_half))
    assert jnp.allclose(y_big, x_big + 0.5, atol=1e-6)

    # 3) Ragged total (cold pad path) + 0-d weight normalization.
    k3 = jax.random.fold_in(key, 2)
    x_rag = jax.random.normal(k3, (3, 5, 7, 11), dtype=jnp.float32)  # 1155 elems
    y_rag = jax.block_until_ready(bias_forward(x_rag, jnp.float32(0.25)))
    assert y_rag.shape == x_rag.shape
    assert jnp.allclose(y_rag, x_rag + 0.25, atol=1e-6)

    # 4) bf16 path (sublane pack = 16).
    x_bf = x.astype(jnp.bfloat16)
    y_bf = jax.block_until_ready(bias_forward(x_bf, weight_half))
    assert y_bf.dtype == jnp.bfloat16
    assert jnp.allclose(y_bf.astype(jnp.float32),
                        (x_bf + jnp.bfloat16(0.5)).astype(jnp.float32), atol=1e-2)

    print("KERNEL_OK")
</pallas_src>

<mosaic_0001>
module attributes {stable_mosaic.version = 11 : i64} {
  func.func @_bias_kernel(%arg0: i32, %arg1: memref<1xf32, #tpu.memory_space<smem>>, %arg2: memref<16x128xf32, #tpu.memory_space<vmem>>, %arg3: memref<16x128xf32, #tpu.memory_space<vmem>>) attributes {dimension_semantics = [#tpu.dimension_semantics<parallel>], iteration_bounds = array<i64: 1>, scalar_prefetch = 0 : i64, scratch_operands = 0 : i64, tpu.core_type = #tpu.core_type<tc>, window_params = [{transform_indices = @transform_0, window_bounds = array<i64: 1>}, {transform_indices = @transform_1, window_bounds = array<i64: 16, 128>}, {transform_indices = @transform_2, window_bounds = array<i64: 16, 128>}]} {
    %c0 = arith.constant 0 : index
    %c0_0 = arith.constant 0 : index
    %0 = vector.load %arg2[%c0, %c0_0] : memref<16x128xf32, #tpu.memory_space<vmem>>, vector<16x128xf32>
    %c0_1 = arith.constant 0 : index
    %1 = memref.load %arg1[%c0_1] : memref<1xf32, #tpu.memory_space<smem>>
    %2 = vector.broadcast %1 : f32 to vector<16x128xf32>
    %3 = arith.addf %0, %2 : vector<16x128xf32>
    %c0_2 = arith.constant 0 : index
    %c0_3 = arith.constant 0 : index
    %4 = vector.load %arg3[%c0_2, %c0_3] : memref<16x128xf32, #tpu.memory_space<vmem>>, vector<16x128xf32>
    tpu.vector_store %arg3[%c0_2, %c0_3], %3 {strides = array<i32>} : memref<16x128xf32, #tpu.memory_space<vmem>>, vector<16x128xf32>,
    return
  }
  func.func @transform_0(%arg0: i32) -> i32 {
    %c0_i32 = arith.constant 0 : i32
    %c0_i32_0 = arith.constant 0 : i32
    return %c0_i32 : i32
  }
  func.func @transform_1(%arg0: i32) -> (i32, i32) {
    %c0_i32 = arith.constant 0 : i32
    %c0_i32_0 = arith.constant 0 : i32
    return %arg0, %c0_i32 : i32, i32
  }
  func.func @transform_2(%arg0: i32) -> (i32, i32) {
    %c0_i32 = arith.constant 0 : i32
    %c0_i32_0 = arith.constant 0 : i32
    return %arg0, %c0_i32 : i32, i32
  }
}

</mosaic_0001>

<llo_original>
// kernel: tpu_custom_call.1
$region0: #{tpu_custom_call.1}
  #allocation0 [shape = 'u32[]', space=smem, size = 0x4, offset = 0x4, fixed_abs, tag = 'smem constant byte address 0x4 - core index']
  #allocation1 [shape = 'u32[72,128]{1,0:T(1,128)}', space=vmem, size = 0x9000, scoped, tag = 'internal scratch']
  #allocation2 [shape = 'f32[1]{0:T(128)S(6)}', space=smem, size = 0x200, scoped, tag = 'scoped memory for tpu_custom_call.1']
  %s0 = inlined_call_operand.<no memory space> [shape: f32[1], index: 0, kind: input, shape index: {}]
  %s1 = inlined_call_operand.hbm [shape: f32[16,128], index: 1, kind: input, shape index: {}]
  %s2 = inlined_call_operand.hbm [shape: f32[16,128], index: 2, kind: output, shape index: {}]
  %s3 = sld [smem:[#allocation0]]
  $region22: #{tpu_custom_call.1} parent=0
    _
  %s5 = ssub.s32 1, %s3
  %s6 = scalar_select 0, %s5, %s3
  %7 = sst [smem:[#allocation2]] %s0
  $region1: #{tpu_custom_call.1} parent=0
    #allocation3 [shape = 'u8[8192]{0}', space=vmem, size = 0x2000, scoped, tag = 'input window, operand 1, single buffered']
    #allocation4 [shape = 's32[1]{0}', space=sflag, size = 0x4, scoped, tag = 'scoped memory for tpu_custom_call.1']
    #allocation5 [shape = 's32[1]{0}', space=sflag, size = 0x4, scoped, tag = 'scoped memory for tpu_custom_call.1']
    #allocation6 [shape = 'u8[8192]{0}', space=vmem, size = 0x2000, scoped, tag = 'output window, operand 0, single buffered']
    %8 = vsyncpa [#allocation4], 0
    %9 = vsyncpa [#allocation5], 0
    // Predicated region
    $region2: #{tpu_custom_call.1} parent=1 // pred_check
      _
    $region3: #{tpu_custom_call.1} parent=1 // pred_check_branch
      %11 = sbr.rel (0) target = $region5
    $region4: #{tpu_custom_call.1} parent=1 // pred_region
      _
    $region5: #{tpu_custom_call.1} parent=1 // pred_fallthru
      _
    // Predicated region
    $region6: #{tpu_custom_call.1} parent=1 // pred_check
      _
    $region7: #{tpu_custom_call.1} parent=1 // pred_check_branch
      %13 = sbr.rel (0) target = $region9
    $region8: #{tpu_custom_call.1} parent=1 // pred_region
      %15 = vsyncadd [#allocation4], 0
      %s16 = sshll.u32 %s1, 4
      %s17 = int_to_ptr.hbm [resolvable:$true] %s16
      %s18 = sshll.u32 [#allocation3], 4
      %s19 = int_to_ptr.vmem [resolvable:$true] %s18
      %24 = dma.hbm_to_vmem [thread:$0]  %s17, 256, %s19, [#allocation4], 128, 128, 8
    $region9: #{tpu_custom_call.1} parent=1 // pred_fallthru
      _
    // Predicated region
    $region10: #{tpu_custom_call.1} parent=1 // pred_check
      _
    $region11: #{tpu_custom_call.1} parent=1 // pred_check_branch
      %26 = sbr.rel (0) target = $region13
    $region12: #{tpu_custom_call.1} parent=1 // pred_region
      %28 = dma.done [#allocation4], 256
    $region13: #{tpu_custom_call.1} parent=1 // pred_fallthru
      _
    %v29 = vld [vmem:[#allocation3] sm:$0xff]
    %v30 = vld [vmem:[#allocation3 + $0x8] sm:$0xff]
    %s31 = sld [smem:[#allocation2]]
    %v32 = vstv %s31
    %v33 = vadd.f32 %v29, %v32
    %v34 = vadd.f32 %v30, %v32
    %35 = vst [vmem:[#allocation6] sm:$0xff] %v33
    %36 = vst [vmem:[#allocation6 + $0x8] sm:$0xff] %v34
    // Predicated region
    $region14: #{tpu_custom_call.1} parent=1 // pred_check
      _
    $region15: #{tpu_custom_call.1} parent=1 // pred_check_branch
      %38 = sbr.rel (0) target = $region17
    $region16: #{tpu_custom_call.1} parent=1 // pred_region
      %40 = vsyncadd [#allocation5], 0
      %s41 = sshll.u32 [#allocation6], 4
      %s42 = int_to_ptr.vmem [resolvable:$true] %s41
      %s43 = sshll.u32 %s2, 4
      %s44 = int_to_ptr.hbm [resolvable:$true] %s43
      %49 = dma.vmem_to_hbm [thread:$0]  %s42, 256, %s44, [#allocation5], 128, 128, 8
    $region17: #{tpu_custom_call.1} parent=1 // pred_fallthru
      _
    // Predicated region
    $region18: #{tpu_custom_call.1} parent=1 // pred_check
      _
    $region19: #{tpu_custom_call.1} parent=1 // pred_check_branch
      %51 = sbr.rel (0) target = $region21
    $region20: #{tpu_custom_call.1} parent=1 // pred_region
      %53 = dma.done [#allocation5], 256
    $region21: #{tpu_custom_call.1} parent=1 // pred_fallthru
      _
    %54 = vsyncpa [#allocation4], 1
    %55 = vsyncpa [#allocation5], 1

</llo_original>
